<compile_context>
chip_gen: v7x
topology: tpu7x:2x2x1
jax: 0.10.0
libtpu: 0.0.40
codegen_flags: <defaults>
</compile_context>

<pallas_src>
import jax
import jax.numpy as jnp
from jax.experimental import pallas as pl
from jax.experimental.pallas import tpu as pltpu


def _ceil_to(x: int, m: int) -> int:
    return ((x + m - 1) // m) * m


def _make_kernel(tc: int, f_pad: int):
    def kernel(f_ref, g_ref, o_ref):
        # f_ref: (TB, F_pad)   g_ref: (1, TB, TC)   o_ref: (TB, TC * F_pad)
        f = f_ref[...]                      # (TB, F_pad) -- loaded once per tile
        gt = g_ref[0]                       # (TB, TC)
        # Static unroll over the class chunk: each iteration writes one lane-dense
        # (TB, F_pad) slab at a 128-aligned static offset -> full-width vst.
        for j in range(tc):
            gcol = gt[:, j:j + 1]           # (TB, 1)
            o_ref[:, j * f_pad:(j + 1) * f_pad] = (gcol * f).astype(o_ref.dtype)
    return kernel


def multi_linear_map(f: jax.Array, g: jax.Array, *,
                     max_tile_bytes: int = 8 * 1024 * 1024) -> jax.Array:
    """Pallas implementation of MultiLinearMap.forward.

    Args:
      f: (B, F)
      g: (B, C)
    Returns:
      (B, C * F) array, dtype of f (matches torch .view(B, -1) ordering: C slow, F fast).
    """
    B, F = f.shape
    Bg, C = g.shape
    assert B == Bg, "batch dims must match"

    out_dtype = f.dtype
    g = g.astype(out_dtype)
    itemsize = jnp.dtype(out_dtype).itemsize
    sub = max(8, 32 // max(itemsize, 1))     # sublane multiple: 8 fp32, 16 bf16, 32 int8
    lane = 128

    F_pad = _ceil_to(F, lane)

    # Classes per grid step (TC): keep one output tile within the VMEM budget even at
    # the minimum batch tile; cap the static in-kernel unroll.
    min_slab = sub * F_pad * itemsize
    TC = max(1, min(C, max_tile_bytes // max(min_slab, 1), 256))
    C_pad = _ceil_to(C, TC)
    num_c = C_pad // TC

    # Batch rows per grid step (TB): fill the tile budget, multiple of `sub`, <= 512.
    TB = (max_tile_bytes // (TC * F_pad * itemsize)) // sub * sub
    TB = max(sub, min(TB, 512, _ceil_to(B, sub)))
    B_pad = _ceil_to(B, TB)

    # Pad inputs (cheap: only B*(F+C) elements touched).
    fp = f if (B_pad == B and F_pad == F) else jnp.pad(f, ((0, B_pad - B), (0, F_pad - F)))
    gp = g if (B_pad == B and C_pad == C) else jnp.pad(g, ((0, B_pad - B), (0, C_pad - C)))
    # Reorganize g so every block's last dim equals the full array dim (always legal,
    # independent of TC): (num_c, B_pad, TC).
    gt = gp.reshape(B_pad, num_c, TC).transpose(1, 0, 2)

    grid = (B_pad // TB, num_c)

    out = pl.pallas_call(
        _make_kernel(TC, F_pad),
        out_shape=jax.ShapeDtypeStruct((B_pad, C_pad * F_pad), out_dtype),
        grid_spec=pltpu.PrefetchScalarGridSpec(
            num_scalar_prefetch=0,
            grid=grid,
            in_specs=[
                # f tile: block index constant along the inner class axis -> fetched
                # once per batch tile (no HBM re-read amplification).
                pl.BlockSpec((TB, F_pad), lambda b, c: (b, 0)),
                # g tile for this class chunk.
                pl.BlockSpec((1, TB, TC), lambda b, c: (c, b, 0)),
            ],
            # 2-D lane-dense output block: last dim TC*F_pad is a large multiple of 128.
            out_specs=pl.BlockSpec((TB, TC * F_pad), lambda b, c: (b, c)),
        ),
        compiler_params=pltpu.CompilerParams(
            dimension_semantics=("parallel", "arbitrary"),
            vmem_limit_bytes=48 * 1024 * 1024,
        ),
    )(fp, gt)

    if B_pad == B and C_pad == C and F_pad == F:
        # Fully aligned: kernel output is already (B, C*F); no reshape/copy needed.
        return out
    # Strip padding: contiguous-minor-dim reshapes are metadata-only; only the slice copies.
    out = out.reshape(B_pad, C_pad, F_pad)[:B, :C, :F]
    return out.reshape(B, C * F)


if __name__ == "__main__":
    key = jax.random.PRNGKey(0)
    kf, kg, kf2, kg2 = jax.random.split(key, 4)

    # Small, unaligned shapes (exercises the padding path).
    B, Fdim, C = 2, 32, 4
    f = jax.random.normal(kf, (B, Fdim), dtype=jnp.float32)
    g = jax.random.normal(kg, (B, C), dtype=jnp.float32)
    out = jax.block_until_ready(multi_linear_map(f, g))
    ref = (g[:, :, None] * f[:, None, :]).reshape(B, C * Fdim)
    assert out.shape == (B, C * Fdim), out.shape
    assert jnp.allclose(out, ref, atol=1e-6, rtol=1e-6)

    # Aligned shapes (no padding: fully lane-dense fast path, output returned directly).
    B2, F2, C2 = 16, 128, 8
    f2 = jax.random.normal(kf2, (B2, F2), dtype=jnp.float32)
    g2 = jax.random.normal(kg2, (B2, C2), dtype=jnp.float32)
    out2 = jax.block_until_ready(multi_linear_map(f2, g2))
    ref2 = (g2[:, :, None] * f2[:, None, :]).reshape(B2, C2 * F2)
    assert out2.shape == (B2, C2 * F2), out2.shape
    assert jnp.allclose(out2, ref2, atol=1e-6, rtol=1e-6)

    print("KERNEL_OK")
</pallas_src>

<mosaic_0001>
module attributes {stable_mosaic.version = 11 : i64} {
  func.func @kernel(%arg0: i32, %arg1: i32, %arg2: memref<8x128xf32, #tpu.memory_space<vmem>>, %arg3: memref<1x8x4xf32, #tpu.memory_space<vmem>>, %arg4: memref<8x512xf32, #tpu.memory_space<vmem>>) attributes {dimension_semantics = [#tpu.dimension_semantics<parallel>, #tpu.dimension_semantics<arbitrary>], iteration_bounds = array<i64: 1, 1>, scalar_prefetch = 0 : i64, scratch_operands = 0 : i64, tpu.core_type = #tpu.core_type<tc>, window_params = [{transform_indices = @transform_0, window_bounds = array<i64: 8, 128>}, {transform_indices = @transform_1, window_bounds = array<i64: 1, 8, 4>}, {transform_indices = @transform_2, window_bounds = array<i64: 8, 512>}]} {
    %c0 = arith.constant 0 : index
    %c0_0 = arith.constant 0 : index
    %0 = vector.load %arg2[%c0, %c0_0] : memref<8x128xf32, #tpu.memory_space<vmem>>, vector<8x128xf32>
    %c0_1 = arith.constant 0 : index
    %c0_2 = arith.constant 0 : index
    %c0_3 = arith.constant 0 : index
    %1 = vector.load %arg3[%c0_1, %c0_2, %c0_3] : memref<1x8x4xf32, #tpu.memory_space<vmem>>, vector<1x8x4xf32>
    %2 = vector.shape_cast %1 : vector<1x8x4xf32> to vector<8x4xf32>
    %3 = vector.extract_strided_slice %2 {offsets = [0, 0], sizes = [8, 1], strides = [1, 1]} : vector<8x4xf32> to vector<8x1xf32>
    %4 = vector.broadcast %3 : vector<8x1xf32> to vector<8x128xf32>
    %5 = arith.mulf %4, %0 : vector<8x128xf32>
    %c0_4 = arith.constant 0 : index
    %c0_5 = arith.constant 0 : index
    %6 = vector.load %arg4[%c0_4, %c0_5] : memref<8x512xf32, #tpu.memory_space<vmem>>, vector<8x128xf32>
    tpu.vector_store %arg4[%c0_4, %c0_5], %5 {strides = array<i32>} : memref<8x512xf32, #tpu.memory_space<vmem>>, vector<8x128xf32>,
    %7 = vector.extract_strided_slice %2 {offsets = [0, 1], sizes = [8, 1], strides = [1, 1]} : vector<8x4xf32> to vector<8x1xf32>
    %8 = vector.broadcast %7 : vector<8x1xf32> to vector<8x128xf32>
    %9 = arith.mulf %8, %0 : vector<8x128xf32>
    %c0_6 = arith.constant 0 : index
    %c128 = arith.constant 128 : index
    %10 = vector.load %arg4[%c0_6, %c128] : memref<8x512xf32, #tpu.memory_space<vmem>>, vector<8x128xf32>
    tpu.vector_store %arg4[%c0_6, %c128], %9 {strides = array<i32>} : memref<8x512xf32, #tpu.memory_space<vmem>>, vector<8x128xf32>,
    %11 = vector.extract_strided_slice %2 {offsets = [0, 2], sizes = [8, 1], strides = [1, 1]} : vector<8x4xf32> to vector<8x1xf32>
    %12 = vector.broadcast %11 : vector<8x1xf32> to vector<8x128xf32>
    %13 = arith.mulf %12, %0 : vector<8x128xf32>
    %c0_7 = arith.constant 0 : index
    %c256 = arith.constant 256 : index
    %14 = vector.load %arg4[%c0_7, %c256] : memref<8x512xf32, #tpu.memory_space<vmem>>, vector<8x128xf32>
    tpu.vector_store %arg4[%c0_7, %c256], %13 {strides = array<i32>} : memref<8x512xf32, #tpu.memory_space<vmem>>, vector<8x128xf32>,
    %15 = vector.extract_strided_slice %2 {offsets = [0, 3], sizes = [8, 1], strides = [1, 1]} : vector<8x4xf32> to vector<8x1xf32>
    %16 = vector.broadcast %15 : vector<8x1xf32> to vector<8x128xf32>
    %17 = arith.mulf %16, %0 : vector<8x128xf32>
    %c0_8 = arith.constant 0 : index
    %c384 = arith.constant 384 : index
    %18 = vector.load %arg4[%c0_8, %c384] : memref<8x512xf32, #tpu.memory_space<vmem>>, vector<8x128xf32>
    tpu.vector_store %arg4[%c0_8, %c384], %17 {strides = array<i32>} : memref<8x512xf32, #tpu.memory_space<vmem>>, vector<8x128xf32>,
    return
  }
  func.func @transform_0(%arg0: i32, %arg1: i32) -> (i32, i32) {
    %c0_i32 = arith.constant 0 : i32
    %c0_i32_0 = arith.constant 0 : i32
    return %arg0, %c0_i32 : i32, i32
  }
  func.func @transform_1(%arg0: i32, %arg1: i32) -> (i32, i32, i32) {
    %c0_i32 = arith.constant 0 : i32
    %c0_i32_0 = arith.constant 0 : i32
    return %arg1, %arg0, %c0_i32 : i32, i32, i32
  }
  func.func @transform_2(%arg0: i32, %arg1: i32) -> (i32, i32) {
    %c0_i32 = arith.constant 0 : i32
    return %arg0, %arg1 : i32, i32
  }
}

</mosaic_0001>

<llo_original>
// kernel: tpu_custom_call.1
$region0: #{tpu_custom_call.1}
  #allocation0 [shape = 'u32[]', space=smem, size = 0x4, offset = 0x4, fixed_abs, tag = 'smem constant byte address 0x4 - core index']
  #allocation1 [shape = 'u32[144,128]{1,0:T(1,128)}', space=vmem, size = 0x12000, scoped, tag = 'internal scratch']
  %s0 = inlined_call_operand.vmem [shape: f32[8,128], index: 0, kind: input, shape index: {}]
  %s1 = inlined_call_operand.vmem [shape: f32[1,8,4], index: 1, kind: input, shape index: {}]
  %s2 = inlined_call_operand.hbm [shape: f32[8,512], index: 2, kind: output, shape index: {}]
  %s3 = sld [smem:[#allocation0]]
  $region18: #{tpu_custom_call.1} parent=0
    _
  %s5 = ssub.s32 1, %s3
  %s6 = scalar_select 0, %s5, %s3
  $region1: #{tpu_custom_call.1} parent=0
    #allocation2 [shape = 'u8[16384]{0}', space=vmem, size = 0x4000, scoped, tag = 'output window, operand 0, single buffered']
    #allocation3 [shape = 's32[1]{0}', space=sflag, size = 0x4, scoped, tag = 'scoped memory for tpu_custom_call.1']
    %7 = vsyncpa [#allocation3], 0
    // Predicated region
    $region2: #{tpu_custom_call.1} parent=1 // pred_check
      _
    $region3: #{tpu_custom_call.1} parent=1 // pred_check_branch
      %9 = sbr.rel (0) target = $region5
    $region4: #{tpu_custom_call.1} parent=1 // pred_region
      _
    $region5: #{tpu_custom_call.1} parent=1 // pred_fallthru
      _
    // Predicated region
    $region6: #{tpu_custom_call.1} parent=1 // pred_check
      _
    $region7: #{tpu_custom_call.1} parent=1 // pred_check_branch
      %11 = sbr.rel (0) target = $region9
    $region8: #{tpu_custom_call.1} parent=1 // pred_region
      _
    $region9: #{tpu_custom_call.1} parent=1 // pred_fallthru
      _
    %v12 = vld [vmem:[%s0] sm:$0xff]
    %v13 = vld [vmem:[%s1] sm:$0xff]
    %15 = vset.pattern.permute.xlu0 0
    %16 = vperm.xlu0 %15, %v13
    %v17 = vpop.permute.xlu0 %16
    %v19 = vmul.f32 %v17, %v12
    %20 = vst [vmem:[#allocation2] sm:$0xff] %v19
    %21 = vset.pattern.permute.xlu0 1
    %22 = vperm.xlu0 %21, %v13
    %v23 = vpop.permute.xlu0 %22
    %v25 = vmul.f32 %v23, %v12
    %26 = vst [vmem:[#allocation2 + $0x8] sm:$0xff] %v25
    %27 = vset.pattern.permute.xlu0 2
    %28 = vperm.xlu0 %27, %v13
    %v29 = vpop.permute.xlu0 %28
    %v31 = vmul.f32 %v29, %v12
    %32 = vst [vmem:[#allocation2 + $0x10] sm:$0xff] %v31
    %33 = vset.pattern.permute.xlu0 3
    %34 = vperm.xlu0 %33, %v13
    %v35 = vpop.permute.xlu0 %34
    %v37 = vmul.f32 %v35, %v12
    %38 = vst [vmem:[#allocation2 + $0x18] sm:$0xff] %v37
    // Predicated region
    $region10: #{tpu_custom_call.1} parent=1 // pred_check
      _
    $region11: #{tpu_custom_call.1} parent=1 // pred_check_branch
      %40 = sbr.rel (0) target = $region13
    $region12: #{tpu_custom_call.1} parent=1 // pred_region
      %s42 = ssub.s32 512, 512
      %43 = vsyncadd [#allocation3], %s42
      %s45 = sshll.u32 [#allocation2], 4
      %s46 = int_to_ptr.vmem [resolvable:$true] %s45
      %48 = dma.vmem_to_hbm [thread:$0]  %s46, 512, %s2, [#allocation3]
    $region13: #{tpu_custom_call.1} parent=1 // pred_fallthru
      _
    // Predicated region
    $region14: #{tpu_custom_call.1} parent=1 // pred_check
      _
    $region15: #{tpu_custom_call.1} parent=1 // pred_check_branch
      %50 = sbr.rel (0) target = $region17
    $region16: #{tpu_custom_call.1} parent=1 // pred_region
      %51 = dma.done [#allocation3], 512
    $region17: #{tpu_custom_call.1} parent=1 // pred_fallthru
      _
    %52 = vsyncpa [#allocation3], 1

</llo_original>
